<compile_context>
chip_gen: v7x
topology: tpu7x:2x2x1
jax: 0.10.0
libtpu: 0.0.40
codegen_flags: <defaults>
</compile_context>

<pallas_src>
import math
import functools

import jax
import jax.numpy as jnp
from jax.experimental import pallas as pl
from jax.experimental.pallas import tpu as pltpu

NEG_INF = -1e9
COMPUTE_DTYPE = jnp.bfloat16   # MXU input dtype; accumulation is always f32.


# --------------------------------------------------------------------------
# Tile-size selection helpers.
# Tiles are chosen so the last dim is a multiple of 128 (or the full dim) and
# the second-to-last is a multiple of 8 (or the full dim).  Largest tile that
# divides evenly wins; VMEM budget per kernel stays well under the default
# scoped limit (<= ~2 MiB with the caps below, incl. double buffering).
# --------------------------------------------------------------------------

_ROW_TILES = (256, 128, 64, 32, 16, 8)     # sublane-aligned row tiles
_LANE_TILES = (256, 128)                   # lane-aligned column tiles
_K_TILES = (512, 256, 128)                 # reduction-axis tiles


def _pick(dim, candidates):
    for c in candidates:
        if c <= dim and dim % c == 0:
            return c
    return dim                               # fall back to the full dimension


# --------------------------------------------------------------------------
# Pallas kernels
# --------------------------------------------------------------------------

def _linear_kernel(x_ref, w_ref, b_ref, o_ref, acc_ref, *, activation):
    """Tiled matmul with f32 accumulator, fused bias (+ optional ReLU)."""
    @pl.when(pl.program_id(2) == 0)
    def _():
        acc_ref[...] = jnp.zeros_like(acc_ref)

    acc_ref[...] += jnp.dot(x_ref[...], w_ref[...],
                            preferred_element_type=jnp.float32)

    @pl.when(pl.program_id(2) == pl.num_programs(2) - 1)
    def _():
        y = acc_ref[...] + b_ref[...]
        if activation == "relu":
            y = jnp.maximum(y, 0.0)
        o_ref[...] = y.astype(o_ref.dtype)


def linear(x, w, b, activation=None):
    """x: (M, K) @ w: (K, N) + b: (N,) -> (M, N) f32, MXU in bf16."""
    M, K = x.shape
    N = w.shape[1]
    tm = _pick(M, _ROW_TILES)
    tn = _pick(N, _LANE_TILES)
    tk = _pick(K, _K_TILES)
    return pl.pallas_call(
        functools.partial(_linear_kernel, activation=activation),
        out_shape=jax.ShapeDtypeStruct((M, N), jnp.float32),
        grid=(M // tm, N // tn, K // tk),
        in_specs=[pl.BlockSpec((tm, tk), lambda i, j, k: (i, k)),
                  pl.BlockSpec((tk, tn), lambda i, j, k: (k, j)),
                  pl.BlockSpec((1, tn), lambda i, j, k: (0, j))],
        out_specs=pl.BlockSpec((tm, tn), lambda i, j, k: (i, j)),
        scratch_shapes=[pltpu.VMEM((tm, tn), jnp.float32)],
        compiler_params=pltpu.CompilerParams(
            dimension_semantics=("parallel", "parallel", "arbitrary")),
    )(x.astype(COMPUTE_DTYPE), w.astype(COMPUTE_DTYPE), b.reshape(1, N))


def _ffn_kernel(x_ref, w1_ref, b1_ref, w2_ref, b2_ref, o_ref, acc_ref):
    """Fused FFN: relu(x @ w1 + b1) @ w2 + b2, streaming d_ff as the k-axis.

    The (tm, tf) hidden tile lives only in registers/VMEM — never in HBM."""
    @pl.when(pl.program_id(1) == 0)
    def _():
        acc_ref[...] = jnp.zeros_like(acc_ref)

    h = jnp.dot(x_ref[...], w1_ref[...],
                preferred_element_type=jnp.float32) + b1_ref[...]
    h = jnp.maximum(h, 0.0)
    acc_ref[...] += jnp.dot(h.astype(w2_ref.dtype), w2_ref[...],
                            preferred_element_type=jnp.float32)

    @pl.when(pl.program_id(1) == pl.num_programs(1) - 1)
    def _():
        o_ref[...] = (acc_ref[...] + b2_ref[...]).astype(o_ref.dtype)


def ffn(x, w1, b1, w2, b2):
    """x: (M, D) -> (M, D); hidden (M, F) stays on-chip."""
    M, D = x.shape
    F = w1.shape[1]
    tm = _pick(M, _ROW_TILES)
    tf = _pick(F, _K_TILES)
    # TODO(synk): feed-forward dropout skipped (eval mode).
    return pl.pallas_call(
        _ffn_kernel,
        out_shape=jax.ShapeDtypeStruct((M, D), jnp.float32),
        grid=(M // tm, F // tf),
        in_specs=[pl.BlockSpec((tm, D), lambda i, f: (i, 0)),
                  pl.BlockSpec((D, tf), lambda i, f: (0, f)),
                  pl.BlockSpec((1, tf), lambda i, f: (0, f)),
                  pl.BlockSpec((tf, D), lambda i, f: (f, 0)),
                  pl.BlockSpec((1, D), lambda i, f: (0, 0))],
        out_specs=pl.BlockSpec((tm, D), lambda i, f: (i, 0)),
        scratch_shapes=[pltpu.VMEM((tm, D), jnp.float32)],
        compiler_params=pltpu.CompilerParams(
            dimension_semantics=("parallel", "arbitrary")),
    )(x.astype(COMPUTE_DTYPE), w1.astype(COMPUTE_DTYPE), b1.reshape(1, F),
      w2.astype(COMPUTE_DTYPE), b2.reshape(1, D))


def _add_layernorm_kernel(x_ref, r_ref, g_ref, b_ref, o_ref, *, eps):
    """Fused residual add + LayerNorm (stats in f32)."""
    x = x_ref[...] + r_ref[...]
    mean = jnp.mean(x, axis=-1, keepdims=True)
    c = x - mean
    var = jnp.mean(c * c, axis=-1, keepdims=True)
    o_ref[...] = c * jax.lax.rsqrt(var + eps) * g_ref[...] + b_ref[...]


def add_layernorm(x, r, g, b, eps=1e-5):
    """LayerNorm(x + r) over last dim.  x, r: (M, D) f32."""
    M, D = x.shape
    tm = _pick(M, _ROW_TILES)
    return pl.pallas_call(
        functools.partial(_add_layernorm_kernel, eps=eps),
        out_shape=jax.ShapeDtypeStruct((M, D), jnp.float32),
        grid=(M // tm,),
        in_specs=[pl.BlockSpec((tm, D), lambda i: (i, 0)),
                  pl.BlockSpec((tm, D), lambda i: (i, 0)),
                  pl.BlockSpec((1, D), lambda i: (0, 0)),
                  pl.BlockSpec((1, D), lambda i: (0, 0))],
        out_specs=pl.BlockSpec((tm, D), lambda i: (i, 0)),
        compiler_params=pltpu.CompilerParams(
            dimension_semantics=("parallel",)),
    )(x, r, g.reshape(1, D), b.reshape(1, D))


def _attn_kernel(q_ref, k_ref, v_ref, bias_ref, o_ref, m_sc, l_sc, acc_sc, *,
                 scale, causal, tq, tk):
    """Flash-style attention block: online softmax over the Lk grid axis."""
    ki = pl.program_id(2)

    @pl.when(ki == 0)
    def _():
        m_sc[...] = jnp.full(m_sc.shape, -1e30, jnp.float32)
        l_sc[...] = jnp.zeros_like(l_sc)
        acc_sc[...] = jnp.zeros_like(acc_sc)

    q = q_ref[0]                                   # (tq, dk) bf16
    k = k_ref[0]                                   # (tk, dk) bf16
    s = jax.lax.dot_general(q, k, (((1,), (1,)), ((), ())),
                            preferred_element_type=jnp.float32) * scale
    s = s + bias_ref[0]                            # (1, tk) key-padding bias

    if causal:
        qi = pl.program_id(1)
        row = qi * tq + jax.lax.broadcasted_iota(jnp.int32, (tq, tk), 0)
        col = ki * tk + jax.lax.broadcasted_iota(jnp.int32, (tq, tk), 1)
        s = jnp.where(row >= col, s, NEG_INF)

    m_prev = m_sc[...]
    m_new = jnp.maximum(m_prev, jnp.max(s, axis=-1, keepdims=True))
    alpha = jnp.exp(m_prev - m_new)
    p = jnp.exp(s - m_new)
    l_sc[...] = alpha * l_sc[...] + jnp.sum(p, axis=-1, keepdims=True)
    acc_sc[...] = alpha * acc_sc[...] + jnp.dot(
        p.astype(v_ref.dtype), v_ref[0], preferred_element_type=jnp.float32)
    m_sc[...] = m_new

    @pl.when(ki == pl.num_programs(2) - 1)
    def _():
        o_ref[0] = (acc_sc[...] *
                    pl.reciprocal(l_sc[...], approx=True)).astype(o_ref.dtype)


def attention(q, k, v, key_bias, scale, h, causal):
    """q: (B*h, Lq, dk) bf16, k/v: (B*h, Lk, dk) bf16,
    key_bias: (B, 1, Lk) f32 additive key-padding bias (shared across heads)."""
    BH, Lq, dk = q.shape
    Lk = k.shape[1]
    tq = _pick(Lq, _ROW_TILES)
    tk = _pick(Lk, _LANE_TILES)
    # TODO(synk): attention dropout skipped (module run in eval mode).
    # TODO(synk): for dk < 128, pack multiple heads per tile for lane density.
    return pl.pallas_call(
        functools.partial(_attn_kernel, scale=scale, causal=causal,
                          tq=tq, tk=tk),
        out_shape=jax.ShapeDtypeStruct((BH, Lq, dk), jnp.float32),
        grid=(BH, Lq // tq, Lk // tk),
        in_specs=[pl.BlockSpec((1, tq, dk), lambda bh, qi, ki: (bh, qi, 0)),
                  pl.BlockSpec((1, tk, dk), lambda bh, qi, ki: (bh, ki, 0)),
                  pl.BlockSpec((1, tk, dk), lambda bh, qi, ki: (bh, ki, 0)),
                  pl.BlockSpec((1, 1, tk),
                               lambda bh, qi, ki: (bh // h, 0, ki))],
        out_specs=pl.BlockSpec((1, tq, dk), lambda bh, qi, ki: (bh, qi, 0)),
        scratch_shapes=[pltpu.VMEM((tq, 1), jnp.float32),
                        pltpu.VMEM((tq, 1), jnp.float32),
                        pltpu.VMEM((tq, dk), jnp.float32)],
        compiler_params=pltpu.CompilerParams(
            dimension_semantics=("parallel", "parallel", "arbitrary")),
    )(q, k, v, key_bias)


# --------------------------------------------------------------------------
# Model glue (plain JAX around the Pallas kernels)
# --------------------------------------------------------------------------

def multi_head_attention(p, q_in, kv_in, key_bias, h, causal, fused_qkv):
    """q_in: (B, Lq, D); kv_in: (B, Lk, D); key_bias: (B, 1, Lk) f32.
    Returns (B*Lq, D) f32."""
    B, Lq, D = q_in.shape
    Lk = kv_in.shape[1]
    dk = D // h
    scale = 1.0 / math.sqrt(dk)

    if fused_qkv:
        # Single fused (D, 3D) projection for self-attention.
        qkv = linear(q_in.reshape(B * Lq, D), p["wqkv"], p["bqkv"])
        qkv = qkv.reshape(B, Lq, 3, h, dk).transpose(2, 0, 3, 1, 4)
        q = qkv[0].reshape(B * h, Lq, dk)
        k = qkv[1].reshape(B * h, Lk, dk)
        v = qkv[2].reshape(B * h, Lk, dk)
    else:
        # Cross-attention: Q from decoder state, fused K/V from encoder output.
        q = linear(q_in.reshape(B * Lq, D), p["wqkv"][:, :D], p["bqkv"][:D])
        q = q.reshape(B, Lq, h, dk).transpose(0, 2, 1, 3).reshape(B * h, Lq, dk)
        kv = linear(kv_in.reshape(B * Lk, D), p["wqkv"][:, D:], p["bqkv"][D:])
        kv = kv.reshape(B, Lk, 2, h, dk).transpose(2, 0, 3, 1, 4)
        k = kv[0].reshape(B * h, Lk, dk)
        v = kv[1].reshape(B * h, Lk, dk)

    q = q.astype(COMPUTE_DTYPE)
    k = k.astype(COMPUTE_DTYPE)
    v = v.astype(COMPUTE_DTYPE)

    o = attention(q, k, v, key_bias, scale, h, causal)
    o = o.reshape(B, h, Lq, dk).transpose(0, 2, 1, 3).reshape(B * Lq, D)
    return linear(o, p["wo"], p["bo"])


def encoder_layer(p, x, src_bias, h):
    B, L, D = x.shape
    a = multi_head_attention(p["attn"], x, x, src_bias, h,
                             causal=False, fused_qkv=True)
    x2 = add_layernorm(x.reshape(B * L, D), a, p["ln1_g"], p["ln1_b"])
    f = ffn(x2, p["w1"], p["b1"], p["w2"], p["b2"])
    x2 = add_layernorm(x2, f, p["ln2_g"], p["ln2_b"])
    return x2.reshape(B, L, D)


def decoder_layer(p, y, enc_out, tgt_bias, src_bias, h, causal):
    B, L, D = y.shape
    sa = multi_head_attention(p["self_attn"], y, y, tgt_bias, h,
                              causal=causal, fused_qkv=True)
    y2 = add_layernorm(y.reshape(B * L, D), sa, p["ln1_g"], p["ln1_b"])
    ca = multi_head_attention(p["cross_attn"], y2.reshape(B, L, D), enc_out,
                              src_bias, h, causal=False, fused_qkv=False)
    y2 = add_layernorm(y2, ca, p["ln2_g"], p["ln2_b"])
    f = ffn(y2, p["w1"], p["b1"], p["w2"], p["b2"])
    y2 = add_layernorm(y2, f, p["ln3_g"], p["ln3_b"])
    return y2.reshape(B, L, D)


def sinusoid_pos_encoding(length, d_model):
    pos = jnp.arange(length, dtype=jnp.float32)[:, None]
    i = jnp.arange(d_model)[None, :]
    angle = pos / jnp.power(10000.0, (2 * (i // 2)).astype(jnp.float32) / d_model)
    return jnp.where(i % 2 == 0, jnp.sin(angle), jnp.cos(angle)).astype(jnp.float32)


def transformer_forward(params, source, target, pad=0, subsequent_mask=True):
    B, Ls = source.shape
    Lt = target.shape[1]
    D = params["d_model"]
    h = params["h"]

    # Key-padding biases built once per forward pass and shared across all
    # layers / heads / query rows.  The causal part of the target mask is
    # generated inside the attention kernel (no (B*h, Lq, Lk) bias in HBM).
    src_bias = jnp.where((source != pad)[:, None, :], 0.0, NEG_INF).astype(jnp.float32)
    tgt_bias = jnp.where((target != pad)[:, None, :], 0.0, NEG_INF).astype(jnp.float32)

    # Encoder
    x = jnp.take(params["src_emb"], source, axis=0) * math.sqrt(D)
    x = x + params["pe"][None, :Ls, :]
    for lp in params["enc_layers"]:
        x = encoder_layer(lp, x, src_bias, h)
    enc_out = x

    # Decoder
    y = jnp.take(params["tgt_emb"], target, axis=0) * math.sqrt(D)
    y = y + params["pe"][None, :Lt, :]
    for lp in params["dec_layers"]:
        y = decoder_layer(lp, y, enc_out, tgt_bias, src_bias, h,
                          causal=subsequent_mask)

    logits = linear(y.reshape(B * Lt, D), params["out_w"], params["out_b"])
    return logits.reshape(B, Lt, -1)


# --------------------------------------------------------------------------
# Deterministic parameter construction
# --------------------------------------------------------------------------

def init_params(key, num_tokens_src, num_tokens_tgt, d_model, d_ff, N, h, max_len):
    keys = list(jax.random.split(key, 256))
    it = iter(keys)

    def xavier(shape):
        fan_in, fan_out = shape[0], shape[1]
        a = math.sqrt(6.0 / (fan_in + fan_out))
        return jax.random.uniform(next(it), shape, jnp.float32, -a, a)

    def attn_p():
        # Q/K/V projections stored pre-fused as a (D, 3D) weight.
        wqkv = jnp.concatenate([xavier((d_model, d_model)) for _ in range(3)], axis=1)
        return dict(
            wqkv=wqkv, bqkv=jnp.zeros((3 * d_model,), jnp.float32),
            wo=xavier((d_model, d_model)), bo=jnp.zeros((d_model,), jnp.float32),
        )

    def ln_pair(prefix):
        return {prefix + "_g": jnp.ones((d_model,), jnp.float32),
                prefix + "_b": jnp.zeros((d_model,), jnp.float32)}

    def enc_layer_p():
        p = dict(attn=attn_p(),
                 w1=xavier((d_model, d_ff)), b1=jnp.zeros((d_ff,), jnp.float32),
                 w2=xavier((d_ff, d_model)), b2=jnp.zeros((d_model,), jnp.float32))
        p.update(ln_pair("ln1")); p.update(ln_pair("ln2"))
        return p

    def dec_layer_p():
        p = dict(self_attn=attn_p(), cross_attn=attn_p(),
                 w1=xavier((d_model, d_ff)), b1=jnp.zeros((d_ff,), jnp.float32),
                 w2=xavier((d_ff, d_model)), b2=jnp.zeros((d_model,), jnp.float32))
        p.update(ln_pair("ln1")); p.update(ln_pair("ln2")); p.update(ln_pair("ln3"))
        return p

    return dict(
        d_model=d_model, h=h,
        src_emb=xavier((num_tokens_src, d_model)),
        tgt_emb=xavier((num_tokens_tgt, d_model)),
        pe=sinusoid_pos_encoding(max_len, d_model),
        enc_layers=[enc_layer_p() for _ in range(N)],
        dec_layers=[dec_layer_p() for _ in range(N)],
        out_w=xavier((d_model, num_tokens_tgt)),
        out_b=jnp.zeros((num_tokens_tgt,), jnp.float32),
    )


# --------------------------------------------------------------------------

if __name__ == "__main__":
    # Small deterministic configuration.
    num_tokens_src = 16
    num_tokens_tgt = 16
    d_model = 32
    d_ff = 64
    N = 2
    h = 2
    B = 2
    Ls = 8
    Lt = 8

    key = jax.random.PRNGKey(0)
    k_par, k_src, k_tgt = jax.random.split(key, 3)

    params = init_params(k_par, num_tokens_src, num_tokens_tgt,
                         d_model, d_ff, N, h, max_len=max(Ls, Lt))

    source = jax.random.randint(k_src, (B, Ls), 0, num_tokens_src, dtype=jnp.int32)
    target = jax.random.randint(k_tgt, (B, Lt), 0, num_tokens_tgt, dtype=jnp.int32)

    logits = transformer_forward(params, source, target, pad=0, subsequent_mask=True)
    logits = jax.block_until_ready(logits)

    assert logits.shape == (B, Lt, num_tokens_tgt)
    assert bool(jnp.all(jnp.isfinite(logits)))
    print("KERNEL_OK")
</pallas_src>

<mosaic_0001>
module attributes {stable_mosaic.version = 11 : i64} {
  func.func @_linear_kernel(%arg0: i32, %arg1: i32, %arg2: i32, %arg3: memref<16x32xbf16, #tpu.memory_space<vmem>>, %arg4: memref<32x96xbf16, #tpu.memory_space<vmem>>, %arg5: memref<1x96xf32, #tpu.memory_space<vmem>>, %arg6: memref<16x96xf32, #tpu.memory_space<vmem>>, %arg7: memref<16x96xf32, #tpu.memory_space<vmem>>) attributes {dimension_semantics = [#tpu.dimension_semantics<parallel>, #tpu.dimension_semantics<parallel>, #tpu.dimension_semantics<arbitrary>], iteration_bounds = array<i64: 1, 1, 1>, scalar_prefetch = 0 : i64, scratch_operands = 1 : i64, tpu.core_type = #tpu.core_type<tc>, window_params = [{transform_indices = @transform_0, window_bounds = array<i64: 16, 32>}, {transform_indices = @transform_1, window_bounds = array<i64: 32, 96>}, {transform_indices = @transform_2, window_bounds = array<i64: 1, 96>}, {transform_indices = @transform_3, window_bounds = array<i64: 16, 96>}]} {
    %c0_i32 = arith.constant 0 : i32
    %0 = arith.cmpi eq, %arg2, %c0_i32 : i32
    %1 = arith.extui %0 : i1 to i32
    %c0_i32_0 = arith.constant 0 : i32
    %2 = arith.cmpi ne, %1, %c0_i32_0 : i32
    scf.if %2 {
      %cst_10 = arith.constant 0.000000e+00 : f32
      %12 = vector.broadcast %cst_10 : f32 to vector<16x96xf32>
      %c0_11 = arith.constant 0 : index
      %c0_12 = arith.constant 0 : index
      %13 = vector.load %arg7[%c0_11, %c0_12] : memref<16x96xf32, #tpu.memory_space<vmem>>, vector<16x96xf32>
      tpu.vector_store %arg7[%c0_11, %c0_12], %12 {strides = array<i32>} : memref<16x96xf32, #tpu.memory_space<vmem>>, vector<16x96xf32>,
    } else {
    }
    %c0 = arith.constant 0 : index
    %c0_1 = arith.constant 0 : index
    %3 = vector.load %arg7[%c0, %c0_1] : memref<16x96xf32, #tpu.memory_space<vmem>>, vector<16x96xf32>
    %c0_2 = arith.constant 0 : index
    %c0_3 = arith.constant 0 : index
    %4 = vector.load %arg3[%c0_2, %c0_3] : memref<16x32xbf16, #tpu.memory_space<vmem>>, vector<16x32xbf16>
    %c0_4 = arith.constant 0 : index
    %c0_5 = arith.constant 0 : index
    %5 = vector.load %arg4[%c0_4, %c0_5] : memref<32x96xbf16, #tpu.memory_space<vmem>>, vector<32x96xbf16>
    %cst = arith.constant dense<0.000000e+00> : vector<16x96xf32>
    %6 = tpu.matmul %4, %5, %cst {dimension_numbers = #tpu.dot_dimension_numbers<[1], [0], [0], [1], [0, 0, 1, 1], [], []>} : vector<16x32xbf16>, vector<32x96xbf16>, vector<16x96xf32> -> vector<16x96xf32>
    %7 = arith.addf %3, %6 : vector<16x96xf32>
    %c0_6 = arith.constant 0 : index
    %c0_7 = arith.constant 0 : index
    %8 = vector.load %arg7[%c0_6, %c0_7] : memref<16x96xf32, #tpu.memory_space<vmem>>, vector<16x96xf32>
    tpu.vector_store %arg7[%c0_6, %c0_7], %7 {strides = array<i32>} : memref<16x96xf32, #tpu.memory_space<vmem>>, vector<16x96xf32>,
    %c0_i32_8 = arith.constant 0 : i32
    %9 = arith.cmpi eq, %arg2, %c0_i32_8 : i32
    %10 = arith.extui %9 : i1 to i32
    %c0_i32_9 = arith.constant 0 : i32
    %11 = arith.cmpi ne, %10, %c0_i32_9 : i32
    scf.if %11 {
      %c0_10 = arith.constant 0 : index
      %c0_11 = arith.constant 0 : index
      %12 = vector.load %arg7[%c0_10, %c0_11] : memref<16x96xf32, #tpu.memory_space<vmem>>, vector<16x96xf32>
      %c0_12 = arith.constant 0 : index
      %c0_13 = arith.constant 0 : index
      %13 = vector.load %arg5[%c0_12, %c0_13] : memref<1x96xf32, #tpu.memory_space<vmem>>, vector<1x96xf32>
      %14 = vector.broadcast %13 : vector<1x96xf32> to vector<16x96xf32>
      %15 = arith.addf %12, %14 : vector<16x96xf32>
      %c0_14 = arith.constant 0 : index
      %c0_15 = arith.constant 0 : index
      %16 = vector.load %arg6[%c0_14, %c0_15] : memref<16x96xf32, #tpu.memory_space<vmem>>, vector<16x96xf32>
      tpu.vector_store %arg6[%c0_14, %c0_15], %15 {strides = array<i32>} : memref<16x96xf32, #tpu.memory_space<vmem>>, vector<16x96xf32>,
    } else {
    }
    return
  }
  func.func @transform_0(%arg0: i32, %arg1: i32, %arg2: i32) -> (i32, i32) {
    %c0_i32 = arith.constant 0 : i32
    return %arg0, %arg2 : i32, i32
  }
  func.func @transform_1(%arg0: i32, %arg1: i32, %arg2: i32) -> (i32, i32) {
    %c0_i32 = arith.constant 0 : i32
    return %arg2, %arg1 : i32, i32
  }
  func.func @transform_2(%arg0: i32, %arg1: i32, %arg2: i32) -> (i32, i32) {
    %c0_i32 = arith.constant 0 : i32
    %c0_i32_0 = arith.constant 0 : i32
    return %c0_i32, %arg1 : i32, i32
  }
  func.func @transform_3(%arg0: i32, %arg1: i32, %arg2: i32) -> (i32, i32) {
    %c0_i32 = arith.constant 0 : i32
    return %arg0, %arg1 : i32, i32
  }
}

</mosaic_0001>

<llo_original>
// kernel: tpu_custom_call.1
$region0: #{tpu_custom_call.1}
  #allocation0 [shape = 'u32[]', space=smem, size = 0x4, offset = 0x4, fixed_abs, tag = 'smem constant byte address 0x4 - core index']
  #allocation1 [shape = 'u32[144,128]{1,0:T(1,128)}', space=vmem, size = 0x12000, scoped, tag = 'internal scratch']
  #allocation2 [shape = 'f32[16,96]{1,0:T(8,128)}', space=vmem, size = 0x2000, scoped, tag = 'scratch operand']
  %s0 = inlined_call_operand.hbm [shape: bf16[16,32], index: 0, kind: input, shape index: {}]
  %s1 = inlined_call_operand.hbm [shape: bf16[32,96], index: 1, kind: input, shape index: {}]
  %s2 = inlined_call_operand.vmem [shape: f32[1,96], index: 2, kind: input, shape index: {}]
  %s3 = inlined_call_operand.hbm [shape: f32[16,96], index: 3, kind: output, shape index: {}]
  %s4 = sld [smem:[#allocation0]]
  $region38: #{tpu_custom_call.1} parent=0
    _
  %s6 = ssub.s32 1, %s4
  %s7 = scalar_select 0, %s6, %s4
  $region1: #{tpu_custom_call.1} parent=0
    #allocation3 [shape = 'u8[4096]{0}', space=vmem, size = 0x1000, scoped, tag = 'input window, operand 0, single buffered']
    #allocation4 [shape = 's32[1]{0}', space=sflag, size = 0x4, scoped, tag = 'scoped memory for tpu_custom_call.1']
    #allocation5 [shape = 's32[1]{0}', space=sflag, size = 0x4, scoped, tag = 'scoped memory for tpu_custom_call.1']
    #allocation6 [shape = 'u8[8192]{0}', space=vmem, size = 0x2000, scoped, tag = 'input window, operand 1, single buffered']
    #allocation7 [shape = 's32[1]{0}', space=sflag, size = 0x4, scoped, tag = 'scoped memory for tpu_custom_call.1']
    #allocation8 [shape = 'u8[8192]{0}', space=vmem, size = 0x2000, scoped, tag = 'output window, operand 0, single buffered']
    %8 = vsyncpa [#allocation4], 0
    %9 = vsyncpa [#allocation7], 0
    %10 = vsyncpa [#allocation5], 0
    // Predicated region
    $region2: #{tpu_custom_call.1} parent=1 // pred_check
      _
    $region3: #{tpu_custom_call.1} parent=1 // pred_check_branch
      %12 = sbr.rel (0) target = $region5
    $region4: #{tpu_custom_call.1} parent=1 // pred_region
      %s14 = ssub.s32 128, 128
      %15 = vsyncadd [#allocation4], %s14
      %s16 = sshll.u32 [#allocation3], 4
      %s17 = int_to_ptr.vmem [resolvable:$true] %s16
      %22 = dma.hbm_to_vmem [thread:$0]  %s0, 128, %s17, [#allocation4], 64, 64, 4
    $region5: #{tpu_custom_call.1} parent=1 // pred_fallthru
      _
    // Predicated region
    $region6: #{tpu_custom_call.1} parent=1 // pred_check
      _
    $region7: #{tpu_custom_call.1} parent=1 // pred_check_branch
      %24 = sbr.rel (0) target = $region9
    $region8: #{tpu_custom_call.1} parent=1 // pred_region
      %s26 = ssub.s32 256, 256
      %27 = vsyncadd [#allocation7], %s26
      %s28 = sshll.u32 [#allocation6], 4
      %s29 = int_to_ptr.vmem [resolvable:$true] %s28
      %34 = dma.hbm_to_vmem [thread:$0]  %s1, 256, %s29, [#allocation7], 64, 64, 4
    $region9: #{tpu_custom_call.1} parent=1 // pred_fallthru
      _
    // Predicated region
    $region10: #{tpu_custom_call.1} parent=1 // pred_check
      _
    $region11: #{tpu_custom_call.1} parent=1 // pred_check_branch
      %36 = sbr.rel (0) target = $region13
    $region12: #{tpu_custom_call.1} parent=1 // pred_region
      _
    $region13: #{tpu_custom_call.1} parent=1 // pred_fallthru
      _
    // Predicated region
    $region14: #{tpu_custom_call.1} parent=1 // pred_check
      _
    $region15: #{tpu_custom_call.1} parent=1 // pred_check_branch
      %38 = sbr.rel (0) target = $region17
    $region16: #{tpu_custom_call.1} parent=1 // pred_region
      %39 = dma.done [#allocation4], 128
    $region17: #{tpu_custom_call.1} parent=1 // pred_fallthru
      _
    // Predicated region
    $region18: #{tpu_custom_call.1} parent=1 // pred_check
      _
    $region19: #{tpu_custom_call.1} parent=1 // pred_check_branch
      %41 = sbr.rel (0) target = $region21
    $region20: #{tpu_custom_call.1} parent=1 // pred_region
      %42 = dma.done [#allocation7], 256
    $region21: #{tpu_custom_call.1} parent=1 // pred_fallthru
      _
    %p44 = scmp.eq.s32.totalorder 0, 0
    // Predicated region
    $region22: #{tpu_custom_call.1} parent=1 // pred_check
      %p45 = pneg %p44
    $region23: #{tpu_custom_call.1} parent=1 // pred_check_branch
      %47 = sbr.rel (%p45) target = $region25
    $region24: #{tpu_custom_call.1} parent=1 // pred_region
      %vm48 = vcmask 785408
      %49 = vst.msk [vmem:[#allocation2] sm:$0xff] %vm48, 0.0
      %50 = vst.msk [vmem:[#allocation2 + $0x8] sm:$0xff] %vm48, 0.0
    $region25: #{tpu_custom_call.1} parent=1 // pred_fallthru
      _
    %v51 = vld [vmem:[#allocation2] sm:$0xff]
    %v52 = vld [vmem:[#allocation2 + $0x8] sm:$0xff]
    %v53 = vld [vmem:[#allocation3] sm:$0xf]
    %v54 = vld [vmem:[#allocation3 + $0x4] sm:$0xf]
    %v55 = vld [vmem:[#allocation6] sm:$0xf]
    %v56 = vld [vmem:[#allocation6 + $0x4] sm:$0xf]
    %v57 = vld [vmem:[#allocation6 + $0x8] sm:$0xf]
    %v58 = vld [vmem:[#allocation6 + $0xc] sm:$0xf]
    %v61 = vunpack.c.l.b16 %v53
    %v62 = vunpack.c.l.b16 %v54
    %v63 = vpack.c.b16 %v62, %v61
    %v68 = vunpack.c.l.b16 %v55
    %v69 = vunpack.c.l.b16 %v56
    %v70 = vunpack.c.l.b16 %v57
    %v71 = vunpack.c.l.b16 %v58
    %v72 = vpack.c.b16 %v69, %v68
    %v73 = vpack.c.b16 %v71, %v70
    %vm76 = vcmask 261120
    %v78 = vsel %vm76, %v63, 0
    %80 = vmatprep.subr.bf16.mxu0 0
    %81 = vmatpush1.bf16.msra.mxu0 %v72
    %82 = vmatprep.subr.bf16.mxu0 0
    %83 = vmatpush1.bf16.msra.mxu0 %v73
    %84 = vmatprep.subr.bf16.mxu0 0
    %85 = vmatpush1.bf16.msra.mxu0 0
    %86 = vmatprep.subr.bf16.mxu0 0
    %87 = vmatpush1.bf16.msra.mxu0 0
    %88 = vmatprep.subr.bf16.mxu0 0
    %89 = vmatpush1.bf16.msra.mxu0 0
    %90 = vmatprep.subr.bf16.mxu0 0
    %91 = vmatpush1.bf16.msra.mxu0 0
    %92 = vmatprep.subr.bf16.mxu0 0
    %93 = vmatpush1.bf16.msra.mxu0 0
    %94 = vmatprep.subr.bf16.mxu0 0
    %95 = vmatpush1.bf16.msra.mxu0 0
    %96 = vmatprep.subr.bf16.mxu0 0
    %97 = vmatpush1.bf16.msra.mxu0 0
    %98 = vmatprep.subr.bf16.mxu0 0
    %99 = vmatpush1.bf16.msra.mxu0 0
    %100 = vmatprep.subr.bf16.mxu0 0
    %101 = vmatpush1.bf16.msra.mxu0 0
    %102 = vmatprep.subr.bf16.mxu0 0
    %103 = vmatpush1.bf16.msra.mxu0 0
    %104 = vmatprep.subr.bf16.mxu0 0
    %105 = vmatpush1.bf16.msra.mxu0 0
    %106 = vmatprep.subr.bf16.mxu0 0
    %107 = vmatpush1.bf16.msra.mxu0 0
    %108 = vmatprep.subr.bf16.mxu0 0
    %109 = vmatpush1.bf16.msra.mxu0 0
    %110 = vmatprep.subr.bf16.mxu0 0
    %111 = vmatpush1.bf16.msra.mxu0 0
    %112 = vmatprep.mubr.bf16.mxu0 0
    %113 = vmatmul.mubr.bf16.gmra.mrb[0].mxu0 %v78
    %v114 = vpop.f32.mrb[0].mxu0
    %v115 = vadd.f32 0.0, %v114
    %v116 = vpop.f32.mrb[0].mxu0
    %v117 = vpop.f32.mrb[0].mxu0
    %v118 = vadd.f32 0.0, %v117
    %v119 = vpop.f32.mrb[0].mxu0
    %120 = vdwg.mxu0
    %v121 = vadd.f32 %v51, %v115
    %v122 = vadd.f32 %v52, %v118
    %vm123 = vcmask 785408
    %124 = vst.msk [vmem:[#allocation2] sm:$0xff] %vm123, %v121
    %125 = vst.msk [vmem:[#allocation2 + $0x8] sm:$0xff] %vm123, %v122
    // Predicated region
    $region26: #{tpu_custom_call.1} parent=1 // pred_check
      %p126 = pneg %p44
    $region27: #{tpu_custom_call.1} parent=1 // pred_check_branch
      %128 = sbr.rel (%p126) target = $region29
    $region28: #{tpu_custom_call.1} parent=1 // pred_region
      %v129 = vld [vmem:[#allocation2] sm:$0xff]
      %v130 = vld [vmem:[#allocation2 + $0x8] sm:$0xff]
      %v131 = vld [vmem:[%s2] sm:$0x1]
      %v133 = vlaneseq
      %v134 = vshrl.u32 %v133, 7
      %v135 = vsub.s32 0, %v134
      %v136 = vrot.slane %v131, %v135
      %v138 = vadd.f32 %v129, %v136
      %v139 = vadd.f32 %v130, %v136
      %140 = vst.msk [vmem:[#allocation8] sm:$0xff] %vm123, %v138
      %141 = vst.msk [vmem:[#allocation8 + $0x8] sm:$0xff] %vm123, %v139
    $region29: #{tpu_custom_call.1} parent=1 // pred_fallthru
      _
    // Predicated region
    $region30: #{tpu_custom_call.1} parent=1 // pred_check
      _
    $region31: #{tpu_custom_call.1} parent=1 // pred_check_branch
      %143 = sbr.rel (0) target = $region33
    $region32: #{tpu_custom_call.1} parent=1 // pred_region
      %s145 = ssub.s32 256, 256
      %146 = vsyncadd [#allocation5], %s145
      %s147 = sshll.u32 [#allocation8], 4
      %s148 = int_to_ptr.vmem [resolvable:$true] %s147
      %153 = dma.vmem_to_hbm [thread:$0]  %s148, 256, %s3, [#allocation5], 128, 128, 8
    $region33: #{tpu_custom_call.1} parent=1 // pred_fallthru
      _
    // Predicated region
    $region34: #{tpu_custom_call.1} parent=1 // pred_check
      _
    $region35: #{tpu_custom_call.1} parent=1 // pred_check_branch
      %155 = sbr.rel (0) target = $region37
    $region36: #{tpu_custom_call.1} parent=1 // pred_region
      %156 = dma.done [#allocation5], 256
    $region37: #{tpu_custom_call.1} parent=1 // pred_fallthru
      _
    %157 = vsyncpa [#allocation4], 1
    %158 = vsyncpa [#allocation7], 1
    %159 = vsyncpa [#allocation5], 1

</llo_original>
